<compile_context>
chip_gen: v5e
topology: v5e:2x2
jax: 0.10.0
libtpu: 0.0.40
codegen_flags: <defaults>
</compile_context>

<pallas_src>
import functools

import jax
import jax.numpy as jnp
from jax.experimental import pallas as pl
from jax.experimental.pallas import tpu as pltpu

_NEG_INF = -1e30  # f32 bias for padded class rows; exp() underflows to exactly 0.


def _round_up(x, m):
    return (x + m - 1) // m * m


@functools.lru_cache(maxsize=1)
def _chip_defaults():
    """Return (max tile_n, vmem_limit_bytes) sized to the chip's VMEM."""
    try:
        vmem = pltpu.get_tpu_info().vmem_capacity_bytes
    except Exception:           # be conservative if the query is unavailable
        vmem = 64 << 20
    if vmem >= (96 << 20):      # v5e / v6e: 128 MiB physical VMEM
        return 8192, 96 << 20
    return 4096, 48 << 20       # v7x: 64 MiB physical VMEM


def _pick_dividing_tile(n, cap):
    """Largest multiple of 128 that divides n and is <= cap (None if n%128)."""
    if n % 128 != 0:
        return None
    best = 128
    t = 128
    lim = min(n, cap)
    while t <= lim:
        if n % t == 0:
            best = t
        t += 128
    return best


# ---------------------------------------------------------------------------
# Fused kernel.  All tensors are channel-major tiles: (channels on sublanes,
# points on lanes).  Weights arrive pre-cast to compute_dtype; biases and all
# accumulation / epilogue math stay f32.
# ---------------------------------------------------------------------------
def _segnet_fused_kernel(x_ref, wbT_ref, bb_ref, wA_ref, bA_ref,
                         w2T_ref, b2_ref, o_ref, *, compute_dtype):
    cdt = compute_dtype
    C = x_ref.shape[0]
    H = w2T_ref.shape[1]

    x = x_ref[...].astype(jnp.float32)                           # (C, tN)

    # --- backbone stand-in: per-point Linear + ReLU as C rank-1 VPU FMAs -----
    # (K=C=3 is far too shallow for the MXU; VPU broadcast-FMAs avoid the push.)
    # TODO(synk): the real PointNeXt encoder (FPS, ball-query grouping, set
    # abstraction) has no clean Pallas equivalent; this per-point Linear+ReLU
    # stands in for `self.pointNeXt(data)`.
    acc = wbT_ref[:, 0:1] * x[0:1, :]
    for c in range(1, C):
        acc = acc + wbT_ref[:, c:c + 1] * x[c:c + 1, :]
    feat = jnp.maximum(acc + bb_ref[...], 0.0)                   # (F, tN) f32
    feat_c = feat.astype(cdt)

    # --- MLP_Res head, first matmul fused with the skip matmul ---------------
    # rows [0:H)    -> hidden pre-activation (w1 @ feat + b1_eff)
    # rows [H:H+Kp) -> skip term             (ws @ feat + bs_eff)
    tmp = jnp.dot(wA_ref[...], feat_c,
                  preferred_element_type=jnp.float32) + bA_ref[...]
    h = jnp.maximum(tmp[:H, :], 0.0)                             # (H, tN) f32
    skip = tmp[H:, :]                                            # (Kp, tN) f32

    out = jnp.dot(w2T_ref[...], h.astype(cdt),
                  preferred_element_type=jnp.float32) + b2_ref[...] + skip

    # --- log_softmax over class rows (sublane axis), f32 ---------------------
    m = jnp.max(out, axis=0, keepdims=True)
    z = out - m
    lse = jnp.log(jnp.sum(jnp.exp(z), axis=0, keepdims=True))
    o_ref[...] = z - lse                                         # (Kp, tN)


def _segnet_pallas(x_cm, wbT, bb, wA_s, bA_s, w2T_s, b2_s, *,
                   tile_n, tiles_per_half, compute_dtype, vmem_limit_bytes):
    B, C, P = x_cm.shape
    Fd = wbT.shape[0]
    HA = wA_s.shape[1]            # H + Kp (fused first-matmul rows)
    Kp = w2T_s.shape[1]           # padded class count (full sublane group)
    H = w2T_s.shape[2]
    tph = tiles_per_half

    kernel = functools.partial(_segnet_fused_kernel, compute_dtype=compute_dtype)
    return pl.pallas_call(
        kernel,
        out_shape=jax.ShapeDtypeStruct((B, Kp, P), jnp.float32),
        grid_spec=pltpu.PrefetchScalarGridSpec(
            num_scalar_prefetch=0,
            grid=(B, 2, tph),     # batch x head x point-tile, all independent
            in_specs=[
                pl.BlockSpec((None, C, tile_n),
                             lambda b, h, i: (b, 0, h * tph + i)),
                pl.BlockSpec((Fd, C), lambda b, h, i: (0, 0)),
                pl.BlockSpec((Fd, 1), lambda b, h, i: (0, 0)),
                pl.BlockSpec((None, HA, Fd), lambda b, h, i: (h, 0, 0)),
                pl.BlockSpec((None, None, HA, 1),
                             lambda b, h, i: (b, h, 0, 0)),
                pl.BlockSpec((None, Kp, H), lambda b, h, i: (h, 0, 0)),
                pl.BlockSpec((None, Kp, 1), lambda b, h, i: (h, 0, 0)),
            ],
            out_specs=pl.BlockSpec((None, Kp, tile_n),
                                   lambda b, h, i: (b, 0, h * tph + i)),
        ),
        compiler_params=pltpu.CompilerParams(
            dimension_semantics=("parallel", "parallel", "parallel"),
            vmem_limit_bytes=vmem_limit_bytes),
    )(x_cm, wbT, bb, wA_s, bA_s, w2T_s, b2_s)


# ---------------------------------------------------------------------------
# SegNet forward (layout plumbing + bias folding in plain JAX; one fused
# Pallas launch for the hot path)
# ---------------------------------------------------------------------------
def seg_net_forward(pcs, joint_info, wb, bb, p_start, p_end, *,
                    num_points, use_joint=True, max_tile_n=None,
                    compute_dtype=jnp.bfloat16, vmem_limit_bytes=None):
    B, n_total, C = pcs.shape
    N = num_points
    assert n_total == 2 * N
    feat_dim = wb.shape[1]
    hid = p_start['w1'].shape[1]
    c_start = p_start['w2'].shape[1]
    c_end = p_end['w2'].shape[1]
    # Pad class dim to a full sublane group (unmasked vst, clean sublane reduce).
    cout_pad = _round_up(max(c_start, c_end), 8)

    cap, vmem_default = _chip_defaults()
    if max_tile_n is None:
        max_tile_n = cap
    if vmem_limit_bytes is None:
        vmem_limit_bytes = vmem_default

    # ---- point-tile selection (avoid any HBM re-pack of the input if possible)
    pcs_cm = jnp.swapaxes(pcs, 1, 2)                             # (B, C, 2N)
    tile_n = _pick_dividing_tile(N, max_tile_n)
    if tile_n is not None:
        x_cm = pcs_cm                                            # no pad/concat
        half_stride = N
    else:
        # Fallback (N not a multiple of 128): pad each half up to a tile multiple.
        tile_n = min(max_tile_n, _round_up(N, 128))
        N_pad = _round_up(N, tile_n)
        pad = N_pad - N
        pw = ((0, 0), (0, 0), (0, pad))
        x_cm = jnp.concatenate(
            [jnp.pad(pcs_cm[:, :, :N], pw), jnp.pad(pcs_cm[:, :, N:], pw)],
            axis=-1)                                             # (B, C, 2*N_pad)
        half_stride = N_pad
    tiles_per_half = half_stride // tile_n

    hp = jax.lax.Precision.HIGHEST
    joint = (joint_info.reshape(B, -1).astype(jnp.float32) if use_joint
             else jnp.zeros((B, 0), jnp.float32))

    def prep_head(p):
        cout = p['w2'].shape[1]
        cpad = cout_pad - cout
        w1T = p['w1'].T.astype(jnp.float32)                      # (H, in_dim)
        wsT = p['ws'].T.astype(jnp.float32)                      # (cout, in_dim)
        w2T = p['w2'].T.astype(jnp.float32)                      # (cout, H)
        if use_joint:
            w1fT, w1jT = w1T[:, :feat_dim], w1T[:, feat_dim:]
            wsfT, wsjT = wsT[:, :feat_dim], wsT[:, feat_dim:]
            # Fold the per-batch-constant joint contribution into the biases.
            b1_eff = (p['b1'].reshape(1, hid)
                      + jnp.einsum('bj,hj->bh', joint, w1jT, precision=hp))
            bs_eff = (p['bs'].reshape(1, cout)
                      + jnp.einsum('bj,cj->bc', joint, wsjT, precision=hp))
        else:
            w1fT, wsfT = w1T, wsT
            b1_eff = jnp.broadcast_to(p['b1'].reshape(1, hid), (B, hid))
            bs_eff = jnp.broadcast_to(p['bs'].reshape(1, cout), (B, cout))
        # Fused first-matmul operands: rows [0:H) -> hidden, [H:H+Kp) -> skip.
        wA = jnp.concatenate(
            [w1fT, jnp.pad(wsfT, ((0, cpad), (0, 0)))], axis=0)  # (H+Kp, F)
        bA = jnp.concatenate(
            [b1_eff, jnp.pad(bs_eff, ((0, 0), (0, cpad)))], axis=1)  # (B, H+Kp)
        # Padded class rows get a -1e30 bias (kept in f32) so log_softmax over
        # all Kp rows equals log_softmax over the real classes.
        w2Tp = jnp.pad(w2T, ((0, cpad), (0, 0)))                 # (Kp, H)
        b2p = jnp.pad(p['b2'].reshape(cout).astype(jnp.float32), (0, cpad),
                      constant_values=_NEG_INF)                  # (Kp,)
        return wA, bA, w2Tp, b2p

    wA0, bA0, w2T0, b20 = prep_head(p_start)
    wA1, bA1, w2T1, b21 = prep_head(p_end)

    # Pre-cast MXU weight operands; biases stay f32.
    wA_s = jnp.stack([wA0, wA1]).astype(compute_dtype)           # (2, H+Kp, F)
    bA_s = jnp.stack([bA0, bA1], axis=1)[..., None].astype(jnp.float32)  # (B,2,H+Kp,1)
    w2T_s = jnp.stack([w2T0, w2T1]).astype(compute_dtype)        # (2, Kp, H)
    b2_s = jnp.stack([b20, b21])[..., None]                      # (2, Kp, 1) f32

    wbT = wb.T.astype(jnp.float32)                               # (F, C)
    bbT = bb.reshape(feat_dim, 1).astype(jnp.float32)            # (F, 1)

    out_cm = _segnet_pallas(x_cm, wbT, bbT, wA_s, bA_s, w2T_s, b2_s,
                            tile_n=tile_n, tiles_per_half=tiles_per_half,
                            compute_dtype=compute_dtype,
                            vmem_limit_bytes=vmem_limit_bytes)   # (B, Kp, P)

    # Back to the module's (B, N, classes) layout (class dim is tiny).
    seg_start = jnp.swapaxes(out_cm[:, :c_start, :N], 1, 2)
    seg_end = jnp.swapaxes(
        out_cm[:, :c_end, half_stride:half_stride + N], 1, 2)
    return seg_start, seg_end


# ---------------------------------------------------------------------------
# Pure-JAX f32 reference (straightforward module math) for correctness checks
# ---------------------------------------------------------------------------
def _ref_forward(pcs, joint_info, wb, bb, p_start, p_end, *, num_points):
    B, n_total, _ = pcs.shape
    hp = jax.lax.Precision.HIGHEST
    feat = jnp.maximum(jnp.einsum('bnc,cf->bnf', pcs, wb, precision=hp) + bb, 0.0)
    joint = jnp.broadcast_to(joint_info, (B, n_total, joint_info.shape[-1]))
    x = jnp.concatenate([feat, joint], axis=-1)

    def head(xh, p):
        h = jnp.maximum(
            jnp.einsum('bnc,ch->bnh', xh, p['w1'], precision=hp) + p['b1'], 0.0)
        out = jnp.einsum('bnh,hk->bnk', h, p['w2'], precision=hp) + p['b2']
        out = out + jnp.einsum('bnc,ck->bnk', xh, p['ws'], precision=hp) + p['bs']
        return jax.nn.log_softmax(out, axis=-1)

    return head(x[:, :num_points], p_start), head(x[:, num_points:], p_end)


if __name__ == "__main__":
    key = jax.random.PRNGKey(0)
    B = 2
    num_points = 512          # points per half (start / end clouds)
    n_total = 2 * num_points
    C = 3
    feat_dim = 32             # analog of cfg.model.encoder_args.width
    mlp_dim = 64              # MLP_Res hidden dim (256 in the real module)
    joint_dim = 7
    in_dim = feat_dim + joint_dim

    keys = jax.random.split(key, 8)
    pcs = jax.random.normal(keys[0], (B, n_total, C), jnp.float32)        # data['pos']
    joint_info = jax.random.normal(keys[1], (B, 1, joint_dim), jnp.float32)

    # backbone stand-in params
    wb = 0.1 * jax.random.normal(keys[2], (C, feat_dim), jnp.float32)
    bb = 0.1 * jax.random.normal(keys[3], (1, feat_dim), jnp.float32)

    def mlp_res_params(k, in_d, hid, out_d):
        ks = jax.random.split(k, 6)
        return dict(
            w1=0.1 * jax.random.normal(ks[0], (in_d, hid), jnp.float32),
            b1=0.1 * jax.random.normal(ks[1], (1, hid), jnp.float32),
            w2=0.1 * jax.random.normal(ks[2], (hid, out_d), jnp.float32),
            b2=0.1 * jax.random.normal(ks[3], (1, out_d), jnp.float32),
            ws=0.1 * jax.random.normal(ks[4], (in_d, out_d), jnp.float32),
            bs=0.1 * jax.random.normal(ks[5], (1, out_d), jnp.float32),
        )

    p_start = mlp_res_params(keys[4], in_dim, mlp_dim, 2)   # mlp_start -> out_dim=2
    p_end = mlp_res_params(keys[5], in_dim, mlp_dim, 3)     # mlp_end   -> out_dim=3

    ref_start, ref_end = _ref_forward(pcs, joint_info, wb, bb, p_start, p_end,
                                      num_points=num_points)

    # 1) exact-semantics check: f32 compute path
    fwd_f32 = jax.jit(functools.partial(seg_net_forward, num_points=num_points,
                                        compute_dtype=jnp.float32))
    s32, e32 = fwd_f32(pcs, joint_info, wb, bb, p_start, p_end)
    jax.block_until_ready((s32, e32))
    assert s32.shape == (B, num_points, 2)
    assert e32.shape == (B, num_points, 3)
    assert jnp.allclose(s32, ref_start, atol=5e-3, rtol=5e-3)
    assert jnp.allclose(e32, ref_end, atol=5e-3, rtol=5e-3)

    # 2) optimized path: bf16 MXU operands, f32 accumulation + f32 log_softmax
    fwd_bf16 = jax.jit(functools.partial(seg_net_forward, num_points=num_points,
                                         compute_dtype=jnp.bfloat16))
    sbf, ebf = fwd_bf16(pcs, joint_info, wb, bb, p_start, p_end)
    jax.block_until_ready((sbf, ebf))
    assert sbf.shape == (B, num_points, 2)
    assert ebf.shape == (B, num_points, 3)
    assert jnp.allclose(sbf, ref_start, atol=5e-2, rtol=5e-2)
    assert jnp.allclose(ebf, ref_end, atol=5e-2, rtol=5e-2)

    print("KERNEL_OK")
</pallas_src>

<mosaic_0001>
module attributes {stable_mosaic.version = 11 : i64} {
  func.func @_segnet_fused_kernel(%arg0: i32, %arg1: i32, %arg2: i32, %arg3: memref<1x3x512xf32, #tpu.memory_space<vmem>>, %arg4: memref<32x3xf32, #tpu.memory_space<vmem>>, %arg5: memref<32x1xf32, #tpu.memory_space<vmem>>, %arg6: memref<1x72x32xf32, #tpu.memory_space<vmem>>, %arg7: memref<1x1x72x1xf32, #tpu.memory_space<vmem>>, %arg8: memref<1x8x64xf32, #tpu.memory_space<vmem>>, %arg9: memref<1x8x1xf32, #tpu.memory_space<vmem>>, %arg10: memref<1x8x512xf32, #tpu.memory_space<vmem>>) attributes {dimension_semantics = [#tpu.dimension_semantics<parallel>, #tpu.dimension_semantics<parallel>, #tpu.dimension_semantics<parallel>], iteration_bounds = array<i64: 2, 2, 1>, scalar_prefetch = 0 : i64, scratch_operands = 0 : i64, tpu.core_type = #tpu.core_type<tc>, window_params = [{transform_indices = @transform_0, window_bounds = array<i64: 1, 3, 512>}, {pipeline_mode = #tpu.pipeline_mode<synchronous>, transform_indices = @transform_1, window_bounds = array<i64: 32, 3>}, {pipeline_mode = #tpu.pipeline_mode<synchronous>, transform_indices = @transform_2, window_bounds = array<i64: 32, 1>}, {transform_indices = @transform_3, window_bounds = array<i64: 1, 72, 32>}, {transform_indices = @transform_4, window_bounds = array<i64: 1, 1, 72, 1>}, {transform_indices = @transform_5, window_bounds = array<i64: 1, 8, 64>}, {transform_indices = @transform_6, window_bounds = array<i64: 1, 8, 1>}, {transform_indices = @transform_7, window_bounds = array<i64: 1, 8, 512>}]} {
    %c0 = arith.constant 0 : index
    %c0_0 = arith.constant 0 : index
    %c0_1 = arith.constant 0 : index
    %0 = vector.load %arg3[%c0, %c0_0, %c0_1] : memref<1x3x512xf32, #tpu.memory_space<vmem>>, vector<1x3x512xf32>
    %1 = vector.shape_cast %0 : vector<1x3x512xf32> to vector<3x512xf32>
    %c0_2 = arith.constant 0 : index
    %c0_3 = arith.constant 0 : index
    %2 = vector.load %arg4[%c0_2, %c0_3] : memref<32x3xf32, #tpu.memory_space<vmem>>, vector<32x1xf32>
    %3 = vector.extract_strided_slice %1 {offsets = [0, 0], sizes = [1, 512], strides = [1, 1]} : vector<3x512xf32> to vector<1x512xf32>
    %4 = vector.broadcast %2 : vector<32x1xf32> to vector<32x512xf32>
    %5 = vector.broadcast %3 : vector<1x512xf32> to vector<32x512xf32>
    %6 = arith.mulf %4, %5 : vector<32x512xf32>
    %c0_4 = arith.constant 0 : index
    %c1 = arith.constant 1 : index
    %7 = vector.load %arg4[%c0_4, %c1] : memref<32x3xf32, #tpu.memory_space<vmem>>, vector<32x1xf32>
    %8 = vector.extract_strided_slice %1 {offsets = [1, 0], sizes = [1, 512], strides = [1, 1]} : vector<3x512xf32> to vector<1x512xf32>
    %9 = vector.broadcast %7 : vector<32x1xf32> to vector<32x512xf32>
    %10 = vector.broadcast %8 : vector<1x512xf32> to vector<32x512xf32>
    %11 = arith.mulf %9, %10 : vector<32x512xf32>
    %12 = arith.addf %6, %11 : vector<32x512xf32>
    %c0_5 = arith.constant 0 : index
    %c2 = arith.constant 2 : index
    %13 = vector.load %arg4[%c0_5, %c2] : memref<32x3xf32, #tpu.memory_space<vmem>>, vector<32x1xf32>
    %14 = vector.extract_strided_slice %1 {offsets = [2, 0], sizes = [1, 512], strides = [1, 1]} : vector<3x512xf32> to vector<1x512xf32>
    %15 = vector.broadcast %13 : vector<32x1xf32> to vector<32x512xf32>
    %16 = vector.broadcast %14 : vector<1x512xf32> to vector<32x512xf32>
    %17 = arith.mulf %15, %16 : vector<32x512xf32>
    %18 = arith.addf %12, %17 : vector<32x512xf32>
    %c0_6 = arith.constant 0 : index
    %c0_7 = arith.constant 0 : index
    %19 = vector.load %arg5[%c0_6, %c0_7] : memref<32x1xf32, #tpu.memory_space<vmem>>, vector<32x1xf32>
    %20 = vector.broadcast %19 : vector<32x1xf32> to vector<32x512xf32>
    %21 = arith.addf %18, %20 : vector<32x512xf32>
    %cst = arith.constant 0.000000e+00 : f32
    %22 = vector.broadcast %cst : f32 to vector<32x512xf32>
    %23 = arith.maximumf %21, %22 : vector<32x512xf32>
    %c0_8 = arith.constant 0 : index
    %c0_9 = arith.constant 0 : index
    %c0_10 = arith.constant 0 : index
    %24 = vector.load %arg6[%c0_8, %c0_9, %c0_10] : memref<1x72x32xf32, #tpu.memory_space<vmem>>, vector<1x72x32xf32>
    %25 = vector.shape_cast %24 : vector<1x72x32xf32> to vector<72x32xf32>
    %cst_11 = arith.constant dense<0.000000e+00> : vector<72x512xf32>
    %26 = tpu.matmul %25, %23, %cst_11 {dimension_numbers = #tpu.dot_dimension_numbers<[1], [0], [0], [1], [0, 0, 1, 1], [], []>} : vector<72x32xf32>, vector<32x512xf32>, vector<72x512xf32> -> vector<72x512xf32>
    %c0_12 = arith.constant 0 : index
    %c0_13 = arith.constant 0 : index
    %c0_14 = arith.constant 0 : index
    %c0_15 = arith.constant 0 : index
    %27 = vector.load %arg7[%c0_12, %c0_13, %c0_14, %c0_15] : memref<1x1x72x1xf32, #tpu.memory_space<vmem>>, vector<1x1x72x1xf32>
    %28 = vector.shape_cast %27 : vector<1x1x72x1xf32> to vector<72x1xf32>
    %29 = vector.broadcast %28 : vector<72x1xf32> to vector<72x512xf32>
    %30 = arith.addf %26, %29 : vector<72x512xf32>
    %31 = vector.extract_strided_slice %30 {offsets = [0, 0], sizes = [64, 512], strides = [1, 1]} : vector<72x512xf32> to vector<64x512xf32>
    %cst_16 = arith.constant 0.000000e+00 : f32
    %32 = vector.broadcast %cst_16 : f32 to vector<64x512xf32>
    %33 = arith.maximumf %31, %32 : vector<64x512xf32>
    %34 = vector.extract_strided_slice %30 {offsets = [64, 0], sizes = [8, 512], strides = [1, 1]} : vector<72x512xf32> to vector<8x512xf32>
    %c0_17 = arith.constant 0 : index
    %c0_18 = arith.constant 0 : index
    %c0_19 = arith.constant 0 : index
    %35 = vector.load %arg8[%c0_17, %c0_18, %c0_19] : memref<1x8x64xf32, #tpu.memory_space<vmem>>, vector<1x8x64xf32>
    %36 = vector.shape_cast %35 : vector<1x8x64xf32> to vector<8x64xf32>
    %cst_20 = arith.constant dense<0.000000e+00> : vector<8x512xf32>
    %37 = tpu.matmul %36, %33, %cst_20 {dimension_numbers = #tpu.dot_dimension_numbers<[1], [0], [0], [1], [0, 0, 1, 1], [], []>} : vector<8x64xf32>, vector<64x512xf32>, vector<8x512xf32> -> vector<8x512xf32>
    %c0_21 = arith.constant 0 : index
    %c0_22 = arith.constant 0 : index
    %c0_23 = arith.constant 0 : index
    %38 = vector.load %arg9[%c0_21, %c0_22, %c0_23] : memref<1x8x1xf32, #tpu.memory_space<vmem>>, vector<1x8x1xf32>
    %39 = vector.shape_cast %38 : vector<1x8x1xf32> to vector<8x1xf32>
    %40 = vector.broadcast %39 : vector<8x1xf32> to vector<8x512xf32>
    %41 = arith.addf %37, %40 : vector<8x512xf32>
    %42 = arith.addf %41, %34 : vector<8x512xf32>
    %cst_24 = arith.constant dense<0xFF800000> : vector<512xf32>
    %43 = vector.multi_reduction <maximumf>, %42, %cst_24 [0] : vector<8x512xf32> to vector<512xf32>
    %44 = vector.shape_cast %43 : vector<512xf32> to vector<1x512xf32>
    %45 = vector.broadcast %44 : vector<1x512xf32> to vector<8x512xf32>
    %46 = arith.subf %42, %45 : vector<8x512xf32>
    %47 = math.exp %46 : vector<8x512xf32>
    %cst_25 = arith.constant dense<0.000000e+00> : vector<512xf32>
    %48 = vector.multi_reduction <add>, %47, %cst_25 [0] : vector<8x512xf32> to vector<512xf32>
    %49 = vector.shape_cast %48 : vector<512xf32> to vector<1x512xf32>
    %50 = math.log %49 : vector<1x512xf32>
    %51 = vector.broadcast %50 : vector<1x512xf32> to vector<8x512xf32>
    %52 = arith.subf %46, %51 : vector<8x512xf32>
    %c0_26 = arith.constant 0 : index
    %c0_27 = arith.constant 0 : index
    %c0_28 = arith.constant 0 : index
    %53 = vector.load %arg10[%c0_26, %c0_27, %c0_28] : memref<1x8x512xf32, #tpu.memory_space<vmem>>, vector<1x8x512xf32>
    %54 = vector.shape_cast %53 : vector<1x8x512xf32> to vector<8x512xf32>
    %55 = vector.shape_cast %52 : vector<8x512xf32> to vector<1x8x512xf32>
    tpu.vector_store %arg10[%c0_26, %c0_27, %c0_28], %55 {strides = array<i32>} : memref<1x8x512xf32, #tpu.memory_space<vmem>>, vector<1x8x512xf32>,
    return
  }
  func.func @transform_0(%arg0: i32, %arg1: i32, %arg2: i32) -> (i32, i32, i32) {
    %c1_i32 = arith.constant 1 : i32
    %0 = arith.muli %arg1, %c1_i32 : i32
    %1 = arith.addi %0, %arg2 : i32
    %c0_i32 = arith.constant 0 : i32
    %c0_i32_0 = arith.constant 0 : i32
    return %arg0, %c0_i32, %1 : i32, i32, i32
  }
  func.func @transform_1(%arg0: i32, %arg1: i32, %arg2: i32) -> (i32, i32) {
    %c0_i32 = arith.constant 0 : i32
    %c0_i32_0 = arith.constant 0 : i32
    %c0_i32_1 = arith.constant 0 : i32
    return %c0_i32, %c0_i32_0 : i32, i32
  }
  func.func @transform_2(%arg0: i32, %arg1: i32, %arg2: i32) -> (i32, i32) {
    %c0_i32 = arith.constant 0 : i32
    %c0_i32_0 = arith.constant 0 : i32
    %c0_i32_1 = arith.constant 0 : i32
    return %c0_i32, %c0_i32_0 : i32, i32
  }
  func.func @transform_3(%arg0: i32, %arg1: i32, %arg2: i32) -> (i32, i32, i32) {
    %c0_i32 = arith.constant 0 : i32
    %c0_i32_0 = arith.constant 0 : i32
    %c0_i32_1 = arith.constant 0 : i32
    return %arg1, %c0_i32, %c0_i32_0 : i32, i32, i32
  }
  func.func @transform_4(%arg0: i32, %arg1: i32, %arg2: i32) -> (i32, i32, i32, i32) {
    %c0_i32 = arith.constant 0 : i32
    %c0_i32_0 = arith.constant 0 : i32
    %c0_i32_1 = arith.constant 0 : i32
    return %arg0, %arg1, %c0_i32, %c0_i32_0 : i32, i32, i32, i32
  }
  func.func @transform_5(%arg0: i32, %arg1: i32, %arg2: i32) -> (i32, i32, i32) {
    %c0_i32 = arith.constant 0 : i32
    %c0_i32_0 = arith.constant 0 : i32
    %c0_i32_1 = arith.constant 0 : i32
    return %arg1, %c0_i32, %c0_i32_0 : i32, i32, i32
  }
  func.func @transform_6(%arg0: i32, %arg1: i32, %arg2: i32) -> (i32, i32, i32) {
    %c0_i32 = arith.constant 0 : i32
    %c0_i32_0 = arith.constant 0 : i32
    %c0_i32_1 = arith.constant 0 : i32
    return %arg1, %c0_i32, %c0_i32_0 : i32, i32, i32
  }
  func.func @transform_7(%arg0: i32, %arg1: i32, %arg2: i32) -> (i32, i32, i32) {
    %c1_i32 = arith.constant 1 : i32
    %0 = arith.muli %arg1, %c1_i32 : i32
    %1 = arith.addi %0, %arg2 : i32
    %c0_i32 = arith.constant 0 : i32
    %c0_i32_0 = arith.constant 0 : i32
    return %arg0, %c0_i32, %1 : i32, i32, i32
  }
}

</mosaic_0001>

<llo_original>
// kernel: seg_net_forward.1
$region0: #{seg_net_forward.1}
  #allocation0 [shape = 'u32[]', space=smem, size = 0x4, offset = 0x4, fixed_abs, tag = 'smem constant byte address 0x4 - core index']
  #allocation1 [shape = 'u32[72,128]{1,0:T(1,128)}', space=vmem, size = 0x9000, scoped, tag = 'internal scratch']
  %s0 = inlined_call_operand.vmem [shape: f32[2,3,1024], index: 0, kind: input, shape index: {}]
  %s1 = inlined_call_operand.vmem [shape: f32[32,3], index: 1, kind: input, shape index: {}]
  %s2 = inlined_call_operand.vmem [shape: f32[32,1], index: 2, kind: input, shape index: {}]
  %s3 = inlined_call_operand.vmem [shape: f32[2,72,32], index: 3, kind: input, shape index: {}]
  %s4 = inlined_call_operand.vmem [shape: f32[2,2,72,1], index: 4, kind: input, shape index: {}]
  %s5 = inlined_call_operand.vmem [shape: f32[2,8,64], index: 5, kind: input, shape index: {}]
  %s6 = inlined_call_operand.vmem [shape: f32[2,8,1], index: 6, kind: input, shape index: {}]
  %s7 = inlined_call_operand.vmem [shape: f32[2,8,1024], index: 7, kind: output, shape index: {}]
  %s8 = sld [smem:[#allocation0]]
  $region61: #{seg_net_forward.1} parent=0
    _
  %s10 = ssub.s32 1, %s8
  %s11 = scalar_select 0, %s10, %s8
  loop: start=0, step=1, limit=6
  $region2: #{seg_net_forward.1} parent=0 // loop_pre_header
    _
  $region3: #{seg_net_forward.1} parent=0 // loop_header
    %s13 = sphi 0, %s17
    %p14 = scmp.ge.s32.totalorder %s13, 6
    %s20 = sphi 0, %s39
    %s21 = sphi 0, %s35
    %s22 = sphi 0, %s31
    %s23 = sphi 0, %s20
    %s24 = sphi 0, %s21
    %s25 = sphi 0, %s22
    %s26 = sphi 0, %s23
    %s27 = sphi 0, %s24
    %s28 = sphi 0, %s25
    %s46 = sphi 0, %s48
    %s49 = sphi 0, %s46
    %s50 = sphi 0, %s49
    %s66 = sphi 0, %s50
    %s70 = sphi 0, %s70
    %s72 = sphi 0, %s70
    %s73 = sphi 0, %s72
    %s87 = sphi 0, %s73
    %s91 = sphi 0, %s91
    %s93 = sphi 0, %s91
    %s94 = sphi 0, %s93
    %s108 = sphi 0, %s94
    %s114 = sphi 0, %s116
    %s117 = sphi 0, %s114
    %s118 = sphi 0, %s117
    %s134 = sphi 0, %s118
    %s142 = sphi 0, %s144
    %s145 = sphi 0, %s142
    %s146 = sphi 0, %s145
    %s162 = sphi 0, %s146
    %s168 = sphi 0, %s170
    %s171 = sphi 0, %s168
    %s172 = sphi 0, %s171
    %s188 = sphi 0, %s172
    %s194 = sphi 0, %s196
    %s197 = sphi 0, %s194
    %s198 = sphi 0, %s197
    %s214 = sphi 0, %s198
    %s224 = sphi 0, %s226
    %s227 = sphi 0, %s224
    %s228 = sphi 0, %s227
    %s244 = sphi 0, %s228
  $region4: #{seg_net_forward.1} parent=0 // loop_header_branch
    %16 = sbr.rel (%p14) target = $region8
  $region5: #{seg_net_forward.1} parent=0 // loop_body
    %s18 = ssub.s32 %s13, 1
    %s19 = ssub.s32 %s13, 2
    %s29 = sadd.s32 1, %s22
    %p30 = scmp.ge.s32.totalorder %s29, 1
    %s31 = scalar_select %p30, 0, %s29
    %s32 = sadd.s32 1, %s21
    %s33 = scalar_select %p30, %s32, %s21
    %p34 = scmp.ge.s32.totalorder %s33, 2
    %s35 = scalar_select %p34, 0, %s33
    %s36 = sadd.s32 1, %s20
    %s37 = scalar_select %p34, %s36, %s20
    %p38 = scmp.ge.s32.totalorder %s37, 2
    %s39 = scalar_select %p38, 0, %s37
    %s40 = sadd.s32 %s21, %s22
    %s41 = sadd.s32 %s35, %s31
    %s42 = ssub.s32 %s20, %s39
    %s43 = ssub.s32 %s40, %s41
    %s44 = sor.u32 %s42, %s43
    %p45 = scmp.eq.s32.totalorder %s44, 0
    %s47 = sadd.s32 %s46, 1
    %s48 = scalar_select %p45, %s46, %s47
    %p51 = pneg %p45
    %p52 = scmp.eq.s32.totalorder %s13, 3
    %p53 = por %p51, %p52
    %p54 = scmp.ne.s32.totalorder %s46, %s49
    %p55 = scmp.eq.s32.totalorder %s13, 0
    %p56 = por %p54, %p55
    %p57 = scmp.ne.s32.totalorder %s46, %s49
    %p58 = scmp.eq.s32.totalorder %s18, 3
    %p59 = por %p57, %p58
    %p60 = scmp.ne.s32.totalorder %s49, %s50
    %p61 = scmp.eq.s32.totalorder %s18, 0
    %p62 = por %p60, %p61
    %p63 = scmp.ne.s32.totalorder %s49, %s50
    %p64 = scmp.eq.s32.totalorder %s19, 3
    %p65 = por %p63, %p64
    %p67 = scmp.ne.s32.totalorder %s50, %s66
    %p68 = scmp.eq.s32.totalorder %s19, 0
    %p69 = por %p67, %p68
    %s71 = sadd.s32 %s70, 1
    %p74 = scmp.eq.s32.totalorder %s13, 3
    %p75 = scmp.ne.s32.totalorder %s70, %s72
    %p76 = scmp.eq.s32.totalorder %s13, 0
    %p77 = por %p75, %p76
    %p78 = scmp.ne.s32.totalorder %s70, %s72
    %p79 = scmp.eq.s32.totalorder %s18, 3
    %p80 = por %p78, %p79
    %p81 = scmp.ne.s32.totalorder %s72, %s73
    %p82 = scmp.eq.s32.totalorder %s18, 0
    %p83 = por %p81, %p82
    %p84 = scmp.ne.s32.totalorder %s72, %s73
    %p85 = scmp.eq.s32.totalorder %s19, 3
    %p86 = por %p84, %p85
    %p88 = scmp.ne.s32.totalorder %s73, %s87
    %p89 = scmp.eq.s32.totalorder %s19, 0
    %p90 = por %p88, %p89
    %s92 = sadd.s32 %s91, 1
    %p95 = scmp.eq.s32.totalorder %s13, 3
    %p96 = scmp.ne.s32.totalorder %s91, %s93
    %p97 = scmp.eq.s32.totalorder %s13, 0
    %p98 = por %p96, %p97
    %p99 = scmp.ne.s32.totalorder %s91, %s93
    %p100 = scmp.eq.s32.totalorder %s18, 3
    %p101 = por %p99, %p100
    %p102 = scmp.ne.s32.totalorder %s93, %s94
    %p103 = scmp.eq.s32.totalorder %s18, 0
    %p104 = por %p102, %p103
    %p105 = scmp.ne.s32.totalorder %s93, %s94
    %p106 = scmp.eq.s32.totalorder %s19, 3
    %p107 = por %p105, %p106
    %p109 = scmp.ne.s32.totalorder %s94, %s108
    %p110 = scmp.eq.s32.totalorder %s19, 0
    %p111 = por %p109, %p110
    %s112 = ssub.s32 %s21, %s35
    %p113 = scmp.eq.s32.totalorder %s112, 0
    %s115 = sadd.s32 %s114, 1
    %s116 = scalar_select %p113, %s114, %s115
    %p119 = pneg %p113
    %p120 = scmp.eq.s32.totalorder %s13, 3
    %p121 = por %p119, %p120
    %p122 = scmp.ne.s32.totalorder %s114, %s117
    %p123 = scmp.eq.s32.totalorder %s13, 0
    %p124 = por %p122, %p123
    %p125 = scmp.ne.s32.totalorder %s114, %s117
    %p126 = scmp.eq.s32.totalorder %s18, 3
    %p127 = por %p125, %p126
    %p128 = scmp.ne.s32.totalorder %s117, %s118
    %p129 = scmp.eq.s32.totalorder %s18, 0
    %p130 = por %p128, %p129
    %p131 = scmp.ne.s32.totalorder %s117, %s118
    %p132 = scmp.eq.s32.totalorder %s19, 3
    %p133 = por %p131, %p132
    %p135 = scmp.ne.s32.totalorder %s118, %s134
    %p136 = scmp.eq.s32.totalorder %s19, 0
    %p137 = por %p135, %p136
    %s138 = ssub.s32 %s20, %s39
    %s139 = ssub.s32 %s21, %s35
    %s140 = sor.u32 %s138, %s139
    %p141 = scmp.eq.s32.totalorder %s140, 0
    %s143 = sadd.s32 %s142, 1
    %s144 = scalar_select %p141, %s142, %s143
    %p147 = pneg %p141
    %p148 = scmp.eq.s32.totalorder %s13, 3
    %p149 = por %p147, %p148
    %p150 = scmp.ne.s32.totalorder %s142, %s145
    %p151 = scmp.eq.s32.totalorder %s13, 0
    %p152 = por %p150, %p151
    %p153 = scmp.ne.s32.totalorder %s142, %s145
    %p154 = scmp.eq.s32.totalorder %s18, 3
    %p155 = por %p153, %p154
    %p156 = scmp.ne.s32.totalorder %s145, %s146
    %p157 = scmp.eq.s32.totalorder %s18, 0
    %p158 = por %p156, %p157
    %p159 = scmp.ne.s32.totalorder %s145, %s146
    %p160 = scmp.eq.s32.totalorder %s19, 3
    %p161 = por %p159, %p160
    %p163 = scmp.ne.s32.totalorder %s146, %s162
    %p164 = scmp.eq.s32.totalorder %s19, 0
    %p165 = por %p163, %p164
    %s166 = ssub.s32 %s21, %s35
    %p167 = scmp.eq.s32.totalorder %s166, 0
    %s169 = sadd.s32 %s168, 1
    %s170 = scalar_select %p167, %s168, %s169
    %p173 = pneg %p167
    %p174 = scmp.eq.s32.totalorder %s13, 3
    %p175 = por %p173, %p174
    %p176 = scmp.ne.s32.totalorder %s168, %s171
    %p177 = scmp.eq.s32.totalorder %s13, 0
    %p178 = por %p176, %p177
    %p179 = scmp.ne.s32.totalorder %s168, %s171
    %p180 = scmp.eq.s32.totalorder %s18, 3
    %p181 = por %p179, %p180
    %p182 = scmp.ne.s32.totalorder %s171, %s172
    %p183 = scmp.eq.s32.totalorder %s18, 0
    %p184 = por %p182, %p183
    %p185 = scmp.ne.s32.totalorder %s171, %s172
    %p186 = scmp.eq.s32.totalorder %s19, 3
    %p187 = por %p185, %p186
    %p189 = scmp.ne.s32.totalorder %s172, %s188
    %p190 = scmp.eq.s32.totalorder %s19, 0
    %p191 = por %p189, %p190
    %s192 = ssub.s32 %s21, %s35
    %p193 = scmp.eq.s32.totalorder %s192, 0
    %s195 = sadd.s32 %s194, 1
    %s196 = scalar_select %p193, %s194, %s195
    %p199 = pneg %p193
    %p200 = scmp.eq.s32.totalorder %s13, 3
    %p201 = por %p199, %p200
    %p202 = scmp.ne.s32.totalorder %s194, %s197
    %p203 = scmp.eq.s32.totalorder %s13, 0
    %p204 = por %p202, %p203
    %p205 = scmp.ne.s32.totalorder %s194, %s197
    %p206 = scmp.eq.s32.totalorder %s18, 3
    %p207 = por %p205, %p206
    %p208 = scmp.ne.s32.totalorder %s197, %s198
    %p209 = scmp.eq.s32.totalorder %s18, 0
    %p210 = por %p208, %p209
    %p211 = scmp.ne.s32.totalorder %s197, %s198
    %p212 = scmp.eq.s32.totalorder %s19, 3
    %p213 = por %p211, %p212
    %p215 = scmp.ne.s32.totalorder %s198, %s214
    %p216 = scmp.eq.s32.totalorder %s19, 0
    %p217 = por %p215, %p216
    %s218 = sadd.s32 %s21, %s22
    %s219 = sadd.s32 %s35, %s31
    %s220 = ssub.s32 %s20, %s39
    %s221 = ssub.s32 %s218, %s219
    %s222 = sor.u32 %s220, %s221
    %p223 = scmp.eq.s32.totalorder %s222, 0
    %s225 = sadd.s32 %s224, 1
    %s226 = scalar_select %p223, %s224, %s225
    %p229 = pneg %p223
    %p230 = scmp.eq.s32.totalorder %s13, 3
    %p231 = por %p229, %p230
    %p232 = scmp.ne.s32.totalorder %s224, %s227
    %p233 = scmp.eq.s32.totalorder %s13, 0
    %p234 = por %p232, %p233
    %p235 = scmp.ne.s32.totalorder %s224, %s227
    %p236 = scmp.eq.s32.totalorder %s18, 3
    %p237 = por %p235, %p236
    %p238 = scmp.ne.s32.totalorder %s227, %s228
    %p239 = scmp.eq.s32.totalorder %s18, 0
    %p240 = por %p238, %p239
    %p241 = scmp.ne.s32.totalorder %s227, %s228
    %p242 = scmp.eq.s32.totalorder %s19, 3
    %p243 = por %p241, %p242
    %p245 = scmp.ne.s32.totalorder %s228, %s244
    %p246 = scmp.eq.s32.totalorder %s19, 0
    %p247 = por %p245, %p246
    %p248 = scmp.le.s32.totalorder 1, %s13
    %p249 = scmp.lt.s32.totalorder %s13, 5
    %p250 = pnand %p248, %p249
    %p251 = pneg %p250
    // Predicated region
    $region9: #{seg_net_forward.1} parent=5 // pred_check
      _
    $region10: #{seg_net_forward.1} parent=5 // pred_check_branch
      %253 = sbr.rel (%p250) target = $region12
    $region11: #{seg_net_forward.1} parent=5 // pred_region
      %s254 = ssub.s32 %s13, 1
      // Predicated region
      $region13: #{seg_net_forward.1} parent=11 // pred_check
        %p255 = pneg %p83
      $region14: #{seg_net_forward.1} parent=11 // pred_check_branch
        %257 = sbr.rel (%p255) target = $region16
      $region15: #{seg_net_forward.1} parent=11 // pred_region
        _
      $region16: #{seg_net_forward.1} parent=11 // pred_fallthru
        _
      // Predicated region
      $region17: #{seg_net_forward.1} parent=11 // pred_check
        %p258 = pneg %p104
      $region18: #{seg_net_forward.1} parent=11 // pred_check_branch
        %260 = sbr.rel (%p258) target = $region20
      $region19: #{seg_net_forward.1} parent=11 // pred_region
        _
      $region20: #{seg_net_forward.1} parent=11 // pred_fallthru
        _
    $region12: #{seg_net_forward.1} parent=5 // pred_fallthru
      _
    %p261 = scmp.lt.s32.totalorder %s13, 4
    // Predicated region
    $region21: #{seg_net_forward.1} parent=5 // pred_check
      %p262 = pneg %p261
    $region22: #{seg_net_forward.1} parent=5 // pred_check_branch
      %264 = sbr.rel (%p262) target = $region24
    $region23: #{seg_net_forward.1} parent=5 // pred_region
      // Predicated region
      $region25: #{seg_net_forward.1} parent=23 // pred_check
        %p265 = pneg %p56
      $region26: #{seg_net_forward.1} parent=23 // pred_check_branch
        %267 = sbr.rel (%p265) target = $region28
      $region27: #{seg_net_forward.1} parent=23 // pred_region
        %s268 = sadd.s32 %s21, %s22
        %s269 = smul.u32 4, %s268
        %p270 = scmp.lt.s32.totalorder %s20, 1
        %s271 = scalar_select %p270, %s20, 1
        %p272 = scmp.lt.s32.totalorder %s269, 7
        %s273 = scalar_select %p272, %s269, 7
        %s274 = smul.addr %s271, 8
        %s275 = sadd.s32 %s273, %s274
        %s276 = smul.addr %s275, 4
        %s277 = scalar_lea.vmem %s0, %s276
        %s278 = sadd.s32 %s21, %s22
        %s279 = smul.u32 4, %s278
      $region28: #{seg_net_forward.1} parent=23 // pred_fallthru
        _
      // Predicated region
      $region29: #{seg_net_forward.1} parent=23 // pred_check
        %p280 = pneg %p124
      $region30: #{seg_net_forward.1} parent=23 // pred_check_branch
        %282 = sbr.rel (%p280) target = $region32
      $region31: #{seg_net_forward.1} parent=23 // pred_region
        %p283 = scmp.lt.s32.totalorder %s21, 1
        %s284 = scalar_select %p283, %s21, 1
        %s285 = smul.addr %s284, 9
        %s286 = smul.addr %s285, 8
        %s287 = scalar_lea.vmem %s3, %s286
      $region32: #{seg_net_forward.1} parent=23 // pred_fallthru
        _
      // Predicated region
      $region33: #{seg_net_forward.1} parent=23 // pred_check
        %p288 = pneg %p152
      $region34: #{seg_net_forward.1} parent=23 // pred_check_branch
        %290 = sbr.rel (%p288) target = $region36
      $region35: #{seg_net_forward.1} parent=23 // pred_region
        %p291 = scmp.lt.s32.totalorder %s20, 1
        %s292 = scalar_select %p291, %s20, 1
        %p293 = scmp.lt.s32.totalorder %s21, 1
        %s294 = scalar_select %p293, %s21, 1
        %s295 = smul.addr %s294, 9
        %s296 = smul.addr %s292, 18
        %s297 = sadd.s32 %s295, %s296
        %s298 = smul.addr %s297, 8
        %s299 = scalar_lea.vmem %s4, %s298
      $region36: #{seg_net_forward.1} parent=23 // pred_fallthru
        _
      // Predicated region
      $region37: #{seg_net_forward.1} parent=23 // pred_check
        %p300 = pneg %p178
      $region38: #{seg_net_forward.1} parent=23 // pred_check_branch
        %302 = sbr.rel (%p300) target = $region40
      $region39: #{seg_net_forward.1} parent=23 // pred_region
        %p303 = scmp.lt.s32.totalorder %s21, 1
        %s304 = scalar_select %p303, %s21, 1
        %s305 = smul.addr %s304, 8
        %s306 = scalar_lea.vmem %s5, %s305
      $region40: #{seg_net_forward.1} parent=23 // pred_fallthru
        _
      // Predicated region
      $region41: #{seg_net_forward.1} parent=23 // pred_check
        %p307 = pneg %p204
      $region42: #{seg_net_forward.1} parent=23 // pred_check_branch
        %309 = sbr.rel (%p307) target = $region44
      $region43: #{seg_net_forward.1} parent=23 // pred_region
        %p310 = scmp.lt.s32.totalorder %s21, 1
        %s311 = scalar_select %p310, %s21, 1
        %s312 = smul.addr %s311, 8
        %s313 = scalar_lea.vmem %s6, %s312
      $region44: #{seg_net_forward.1} parent=23 // pred_fallthru
        _
    $region24: #{seg_net_forward.1} parent=5 // pred_fallthru
      _
    %p314 = scmp.le.s32.totalorder 1, %s13
    %p315 = scmp.lt.s32.totalorder %s13, 5
    %p316 = pnand %p314, %p315
    %p317 = pneg %p316
    // Predicated region
    $region45: #{seg_net_forward.1} parent=5 // pred_check
      _
    $region46: #{seg_net_forward.1} parent=5 // pred_check_branch
      %319 = sbr.rel (%p316) target = $region48
    $region47: #{seg_net_forward.1} parent=5 // pred_region
      %s320 = ssub.s32 %s13, 1
      %s321 = sadd.s32 %s24, %s25
      %s322 = smul.u32 4, %s321
      %p323 = scmp.lt.s32.totalorder %s23, 1
      %s324 = scalar_select %p323, %s23, 1
      %p325 = scmp.lt.s32.totalorder %s322, 7
      %s326 = scalar_select %p325, %s322, 7
      %s327 = smul.addr %s324, 8
      %s328 = sadd.s32 %s326, %s327
      %s329 = smul.addr %s328, 4
      %s330 = scalar_lea.vmem %s0, %s329
      %p331 = pneg %p62
      %p332 = pneg %p59
      %p333 = pneg %p83
      %p334 = pneg %p80
      %p335 = pneg %p104
      %p336 = pneg %p101
      %p337 = scmp.lt.s32.totalorder %s24, 1
      %s338 = scalar_select %p337, %s24, 1
      %s339 = smul.addr %s338, 9
      %s340 = smul.addr %s339, 8
      %s341 = scalar_lea.vmem %s3, %s340
      %p342 = pneg %p130
      %p343 = pneg %p127
      %p344 = scmp.lt.s32.totalorder %s23, 1
      %s345 = scalar_select %p344, %s23, 1
      %p346 = scmp.lt.s32.totalorder %s24, 1
      %s347 = scalar_select %p346, %s24, 1
      %s348 = smul.addr %s347, 9
      %s349 = smul.addr %s345, 18
      %s350 = sadd.s32 %s348, %s349
      %s351 = smul.addr %s350, 8
      %s352 = scalar_lea.vmem %s4, %s351
      %p353 = pneg %p158
      %p354 = pneg %p155
      %p355 = scmp.lt.s32.totalorder %s24, 1
      %s356 = scalar_select %p355, %s24, 1
      %s357 = smul.addr %s356, 8
      %s358 = scalar_lea.vmem %s5, %s357
      %p359 = pneg %p184
      %p360 = pneg %p181
      %p361 = scmp.lt.s32.totalorder %s24, 1
      %s362 = scalar_select %p361, %s24, 1
      %s363 = smul.addr %s362, 8
      %s364 = scalar_lea.vmem %s6, %s363
      %p365 = pneg %p210
      %p366 = pneg %p207
      %p367 = pneg %p240
      %p368 = pneg %p237
      %s369 = sadd.s32 %s24, %s25
      %s370 = smul.u32 4, %s369
      %p371 = scmp.lt.s32.totalorder %s23, 1
      %s372 = scalar_select %p371, %s23, 1
      %p373 = scmp.lt.s32.totalorder %s370, 7
      %s374 = scalar_select %p373, %s370, 7
      %s375 = smul.addr %s372, 8
      %s376 = sadd.s32 %s374, %s375
      %s377 = smul.addr %s376, 8
      %s378 = scalar_lea.vmem %s7, %s377
      %s379 = sadd.s32 %s24, %s25
      %s380 = smul.u32 4, %s379
      %p381 = scmp.lt.s32.totalorder %s23, 1
      %s382 = scalar_select %p381, %s23, 1
      %p383 = scmp.lt.s32.totalorder %s380, 7
      %s384 = scalar_select %p383, %s380, 7
      %s385 = smul.addr %s382, 8
      %s386 = sadd.s32 %s384, %s385
      %s387 = smul.addr %s386, 4
      %s388 = scalar_lea.vmem %s0, %s387
      %s389 = sadd.s32 %s24, %s25
      %s390 = smul.u32 4, %s389
      %p391 = scmp.lt.s32.totalorder %s24, 1
      %s392 = scalar_select %p391, %s24, 1
      %s393 = smul.addr %s392, 9
      %s394 = smul.addr %s393, 8
      %s395 = scalar_lea.vmem %s3, %s394
      %p396 = scmp.lt.s32.totalorder %s23, 1
      %s397 = scalar_select %p396, %s23, 1
      %p398 = scmp.lt.s32.totalorder %s24, 1
      %s399 = scalar_select %p398, %s24, 1
      %s400 = smul.addr %s399, 9
      %s401 = smul.addr %s397, 18
      %s402 = sadd.s32 %s400, %s401
      %s403 = smul.addr %s402, 8
      %s404 = scalar_lea.vmem %s4, %s403
      %p405 = scmp.lt.s32.totalorder %s24, 1
      %s406 = scalar_select %p405, %s24, 1
      %s407 = smul.addr %s406, 8
      %s408 = scalar_lea.vmem %s5, %s407
      %p409 = scmp.lt.s32.totalorder %s24, 1
      %s410 = scalar_select %p409, %s24, 1
      %s411 = smul.addr %s410, 8
      %s412 = scalar_lea.vmem %s6, %s411
      %s413 = sadd.s32 %s24, %s25
      %s414 = smul.u32 4, %s413
      %p415 = scmp.lt.s32.totalorder %s23, 1
      %s416 = scalar_select %p415, %s23, 1
      %p417 = scmp.lt.s32.totalorder %s414, 7
      %s418 = scalar_select %p417, %s414, 7
      %s419 = smul.addr %s416, 8
      %s420 = sadd.s32 %s418, %s419
      %s421 = smul.addr %s420, 8
      %s422 = scalar_lea.vmem %s7, %s421
      %s423 = sadd.s32 %s24, %s25
      %s424 = smul.u32 4, %s423
      %v425 = vld [vmem:[%s388] sm:$0x77]
      %v426 = vld [vmem:[%s388 + $0x8] sm:$0x77]
      %v427 = vld [vmem:[%s1] sm:$0xff]
      %v428 = vld [vmem:[%s1 + $0x8] sm:$0xff]
      %v429 = vld [vmem:[%s1 + $0x10] sm:$0xff]
      %v430 = vld [vmem:[%s1 + $0x18] sm:$0xff]
      %432 = vset.pattern.permute.xlu0 0
      %433 = vperm.xlu0 %432, %v427
      %v434 = vpop.permute.xlu0 %433
      %437 = vset.pattern.permute.xlu0 0
      %438 = vperm.xlu0 %437, %v428
      %v439 = vpop.permute.xlu0 %438
      %442 = vset.pattern.permute.xlu0 0
      %443 = vperm.xlu0 %442, %v429
      %v444 = vpop.permute.xlu0 %443
      %447 = vset.pattern.permute.xlu0 0
      %448 = vperm.xlu0 %447, %v430
      %v449 = vpop.permute.xlu0 %448
      %v453 = vperm.slane %v425, 0
      %v454 = vperm.slane %v425, 4
      %v455 = vperm.slane %v426, 0
      %v456 = vperm.slane %v426, 4
      %v461 = vperm.slane %v453, 0
      %v462 = vperm.slane %v454, 0
      %v463 = vperm.slane %v455, 0
      %v464 = vperm.slane %v456, 0
      %v465 = vmul.f32 %v434, %v461
      %v466 = vmul.f32 %v434, %v462
      %v467 = vmul.f32 %v434, %v463
      %v468 = vmul.f32 %v434, %v464
      %v469 = vmul.f32 %v439, %v461
      %v470 = vmul.f32 %v439, %v462
      %v471 = vmul.f32 %v439, %v463
      %v472 = vmul.f32 %v439, %v464
      %v473 = vmul.f32 %v444, %v461
      %v474 = vmul.f32 %v444, %v462
      %v475 = vmul.f32 %v444, %v463
      %v476 = vmul.f32 %v444, %v464
      %v477 = vmul.f32 %v449, %v461
      %v478 = vmul.f32 %v449, %v462
      %v479 = vmul.f32 %v449, %v463
      %v480 = vmul.f32 %v449, %v464
      %481 = vset.pattern.permute.xlu0 1
      %482 = vperm.xlu0 %481, %v427
      %v483 = vpop.permute.xlu0 %482
      %485 = vset.pattern.permute.xlu0 1
      %486 = vperm.xlu0 %485, %v428
      %v487 = vpop.permute.xlu0 %486
      %489 = vset.pattern.permute.xlu0 1
      %490 = vperm.xlu0 %489, %v429
      %v491 = vpop.permute.xlu0 %490
      %493 = vset.pattern.permute.xlu0 1
      %494 = vperm.xlu0 %493, %v430
      %v495 = vpop.permute.xlu0 %494
      %v497 = vperm.slane %v425, 1
      %v498 = vperm.slane %v425, 5
      %v499 = vperm.slane %v426, 1
      %v500 = vperm.slane %v426, 5
      %v505 = vperm.slane %v497, 1
      %v506 = vperm.slane %v498, 1
      %v507 = vperm.slane %v499, 1
      %v508 = vperm.slane %v500, 1
      %v509 = vmul.f32 %v483, %v505
      %v510 = vmul.f32 %v483, %v506
      %v511 = vmul.f32 %v483, %v507
      %v512 = vmul.f32 %v483, %v508
      %v513 = vmul.f32 %v487, %v505
      %v514 = vmul.f32 %v487, %v506
      %v515 = vmul.f32 %v487, %v507
      %v516 = vmul.f32 %v487, %v508
      %v517 = vmul.f32 %v491, %v505
      %v518 = vmul.f32 %v491, %v506
      %v519 = vmul.f32 %v491, %v507
      %v520 = vmul.f32 %v491, %v508
      %v521 = vmul.f32 %v495, %v505
      %v522 = vmul.f32 %v495, %v506
      %v523 = vmul.f32 %v495, %v507
      %v524 = vmul.f32 %v495, %v508
      %v525 = vadd.f32 %v465, %v509
      %v526 = vadd.f32 %v466, %v510
      %v527 = vadd.f32 %v467, %v511
      %v528 = vadd.f32 %v468, %v512
      %v529 = vadd.f32 %v469, %v513
      %v530 = vadd.f32 %v470, %v514
      %v531 = vadd.f32 %v471, %v515
      %v532 = vadd.f32 %v472, %v516
      %v533 = vadd.f32 %v473, %v517
      %v534 = vadd.f32 %v474, %v518
      %v535 = vadd.f32 %v475, %v519
      %v536 = vadd.f32 %v476, %v520
      %v537 = vadd.f32 %v477, %v521
      %v538 = vadd.f32 %v478, %v522
      %v539 = vadd.f32 %v479, %v523
      %v540 = vadd.f32 %v480, %v524
      %541 = vset.pattern.permute.xlu0 2
      %542 = vperm.xlu0 %541, %v427
      %v543 = vpop.permute.xlu0 %542
      %545 = vset.pattern.permute.xlu0 2
      %546 = vperm.xlu0 %545, %v428
      %v547 = vpop.permute.xlu0 %546
      %549 = vset.pattern.permute.xlu0 2
      %550 = vperm.xlu0 %549, %v429
      %v551 = vpop.permute.xlu0 %550
      %553 = vset.pattern.permute.xlu0 2
      %554 = vperm.xlu0 %553, %v430
      %v555 = vpop.permute.xlu0 %554
      %v557 = vperm.slane %v425, 2
      %v558 = vperm.slane %v425, 6
      %v559 = vperm.slane %v426, 2
      %v560 = vperm.slane %v426, 6
      %v565 = vperm.slane %v557, 2
      %v566 = vperm.slane %v558, 2
      %v567 = vperm.slane %v559, 2
      %v568 = vperm.slane %v560, 2
      %v569 = vmul.f32 %v543, %v565
      %v570 = vmul.f32 %v543, %v566
      %v571 = vmul.f32 %v543, %v567
      %v572 = vmul.f32 %v543, %v568
      %v573 = vmul.f32 %v547, %v565
      %v574 = vmul.f32 %v547, %v566
      %v575 = vmul.f32 %v547, %v567
      %v576 = vmul.f32 %v547, %v568
      %v577 = vmul.f32 %v551, %v565
      %v578 = vmul.f32 %v551, %v566
      %v579 = vmul.f32 %v551, %v567
      %v580 = vmul.f32 %v551, %v568
      %v581 = vmul.f32 %v555, %v565
      %v582 = vmul.f32 %v555, %v566
      %v583 = vmul.f32 %v555, %v567
      %v584 = vmul.f32 %v555, %v568
      %v585 = vadd.f32 %v525, %v569
      %v586 = vadd.f32 %v526, %v570
      %v587 = vadd.f32 %v527, %v571
      %v588 = vadd.f32 %v528, %v572
      %v589 = vadd.f32 %v529, %v573
      %v590 = vadd.f32 %v530, %v574
      %v591 = vadd.f32 %v531, %v575
      %v592 = vadd.f32 %v532, %v576
      %v593 = vadd.f32 %v533, %v577
      %v594 = vadd.f32 %v534, %v578
      %v595 = vadd.f32 %v535, %v579
      %v596 = vadd.f32 %v536, %v580
      %v597 = vadd.f32 %v537, %v581
      %v598 = vadd.f32 %v538, %v582
      %v599 = vadd.f32 %v539, %v583
      %v600 = vadd.f32 %v540, %v584
      %v601 = vld [vmem:[%s2] sm:$0xff]
      %v602 = vld [vmem:[%s2 + $0x8] sm:$0xff]
      %v603 = vld [vmem:[%s2 + $0x10] sm:$0xff]
      %v604 = vld [vmem:[%s2 + $0x18] sm:$0xff]
      %606 = vset.pattern.permute.xlu0 0
      %607 = vperm.xlu0 %606, %v601
      %v608 = vpop.permute.xlu0 %607
      %611 = vset.pattern.permute.xlu0 0
      %612 = vperm.xlu0 %611, %v602
      %v613 = vpop.permute.xlu0 %612
      %616 = vset.pattern.permute.xlu0 0
      %617 = vperm.xlu0 %616, %v603
      %v618 = vpop.permute.xlu0 %617
      %621 = vset.pattern.permute.xlu0 0
      %622 = vperm.xlu0 %621, %v604
      %v623 = vpop.permute.xlu0 %622
      %v625 = vadd.f32 %v585, %v608
      %v626 = vadd.f32 %v586, %v608
      %v627 = vadd.f32 %v587, %v608
      %v628 = vadd.f32 %v588, %v608
      %v629 = vadd.f32 %v589, %v613
      %v630 = vadd.f32 %v590, %v613
      %v631 = vadd.f32 %v591, %v613
      %v632 = vadd.f32 %v592, %v613
      %v633 = vadd.f32 %v593, %v618
      %v634 = vadd.f32 %v594, %v618
      %v635 = vadd.f32 %v595, %v618
      %v636 = vadd.f32 %v596, %v618
      %v637 = vadd.f32 %v597, %v623
      %v638 = vadd.f32 %v598, %v623
      %v639 = vadd.f32 %v599, %v623
      %v640 = vadd.f32 %v600, %v623
      %v641 = vmax.f32 %v625, 0.0
      %v642 = vmax.f32 %v626, 0.0
      %v643 = vmax.f32 %v627, 0.0
      %v644 = vmax.f32 %v628, 0.0
      %v645 = vmax.f32 %v629, 0.0
      %v646 = vmax.f32 %v630, 0.0
      %v647 = vmax.f32 %v631, 0.0
      %v648 = vmax.f32 %v632, 0.0
      %v649 = vmax.f32 %v633, 0.0
      %v650 = vmax.f32 %v634, 0.0
      %v651 = vmax.f32 %v635, 0.0
      %v652 = vmax.f32 %v636, 0.0
      %v653 = vmax.f32 %v637, 0.0
      %v654 = vmax.f32 %v638, 0.0
      %v655 = vmax.f32 %v639, 0.0
      %v656 = vmax.f32 %v640, 0.0
      %v657 = vld [vmem:[%s395] sm:$0xff]
      %v658 = vld [vmem:[%s395 + $0x8] sm:$0xff]
      %v659 = vld [vmem:[%s395 + $0x10] sm:$0xff]
      %v660 = vld [vmem:[%s395 + $0x18] sm:$0xff]
      %v661 = vld [vmem:[%s395 + $0x20] sm:$0xff]
      %v662 = vld [vmem:[%s395 + $0x28] sm:$0xff]
      %v663 = vld [vmem:[%s395 + $0x30] sm:$0xff]
      %v664 = vld [vmem:[%s395 + $0x38] sm:$0xff]
      %v665 = vld [vmem:[%s395 + $0x40] sm:$0xff]
      %v666 = vld [vmem:[%s404] sm:$0xff]
      %v667 = vld [vmem:[%s404 + $0x8] sm:$0xff]
      %v668 = vld [vmem:[%s404 + $0x10] sm:$0xff]
      %v669 = vld [vmem:[%s404 + $0x18] sm:$0xff]
      %v670 = vld [vmem:[%s404 + $0x20] sm:$0xff]
      %v671 = vld [vmem:[%s404 + $0x28] sm:$0xff]
      %v672 = vld [vmem:[%s404 + $0x30] sm:$0xff]
      %v673 = vld [vmem:[%s404 + $0x38] sm:$0xff]
      %v674 = vld [vmem:[%s404 + $0x40] sm:$0xff]
      %676 = vset.pattern.permute.xlu0 0
      %677 = vperm.xlu0 %676, %v666
      %v678 = vpop.permute.xlu0 %677
      %681 = vset.pattern.permute.xlu0 0
      %682 = vperm.xlu0 %681, %v667
      %v683 = vpop.permute.xlu0 %682
      %686 = vset.pattern.permute.xlu0 0
      %687 = vperm.xlu0 %686, %v668
      %v688 = vpop.permute.xlu0 %687
      %691 = vset.pattern.permute.xlu0 0
      %692 = vperm.xlu0 %691, %v669
      %v693 = vpop.permute.xlu0 %692
      %696 = vset.pattern.permute.xlu0 0
      %697 = vperm.xlu0 %696, %v670
      %v698 = vpop.permute.xlu0 %697
      %701 = vset.pattern.permute.xlu0 0
      %702 = vperm.xlu0 %701, %v671
      %v703 = vpop.permute.xlu0 %702
      %706 = vset.pattern.permute.xlu0 0
      %707 = vperm.xlu0 %706, %v672
      %v708 = vpop.permute.xlu0 %707
      %711 = vset.pattern.permute.xlu0 0
      %712 = vperm.xlu0 %711, %v673
      %v713 = vpop.permute.xlu0 %712
      %716 = vset.pattern.permute.xlu0 0
      %717 = vperm.xlu0 %716, %v674
      %v718 = vpop.permute.xlu0 %717
      %vm720 = vcmask 261120
      %v722 = vsel %vm720, %v657, 0
      %v725 = vsel %vm720, %v658, 0
      %v728 = vsel %vm720, %v659, 0
      %v731 = vsel %vm720, %v660, 0
      %v734 = vsel %vm720, %v661, 0
      %v737 = vsel %vm720, %v662, 0
      %v740 = vsel %vm720, %v663, 0
      %v743 = vsel %vm720, %v664, 0
      %v746 = vsel %vm720, %v665, 0
      %748 = vmatpush.msra.mxu0 0.0
      %749 = vmatpush.msra.mxu0 0.0
      %750 = vmatpush.msra.mxu0 0.0
      %751 = vmatpush.msra.mxu0 0.0
      %752 = vmatpush.msra.mxu0 0.0
      %753 = vmatpush.msra.mxu0 0.0
      %754 = vmatpush.msra.mxu0 0.0
      %755 = vmatpush.msra.mxu0 0.0
      %756 = vmatpush.msra.mxu0 0.0
      %757 = vmatpush.msra.mxu0 0.0
      %758 = vmatpush.msra.mxu0 0.0
      %759 = vmatpush.msra.mxu0 0.0
      %760 = vmatpush.msra.mxu0 %v653
      %761 = vmatpush.msra.mxu0 %v649
      %762 = vmatpush.msra.mxu0 %v645
      %763 = vmatpush.msra.mxu0 %v641
      %764 = vmatmul.f32.gmra.mxu0 %v722
      %v765 = vpop.f32.mrf.mxu0
      %v766 = vadd.f32 %v678, %v765
      %767 = vmatmul.f32.gmra.mxu0 %v725
      %v768 = vpop.f32.mrf.mxu0
      %v769 = vadd.f32 %v683, %v768
      %770 = vmatmul.f32.gmra.mxu0 %v728
      %v771 = vpop.f32.mrf.mxu0
      %v772 = vadd.f32 %v688, %v771
      %773 = vmatmul.f32.gmra.mxu0 %v731
      %v774 = vpop.f32.mrf.mxu0
      %v775 = vadd.f32 %v693, %v774
      %776 = vmatmul.f32.gmra.mxu0 %v734
      %v777 = vpop.f32.mrf.mxu0
      %v778 = vadd.f32 %v698, %v777
      %779 = vmatmul.f32.gmra.mxu0 %v737
      %v780 = vpop.f32.mrf.mxu0
      %v781 = vadd.f32 %v703, %v780
      %782 = vmatmul.f32.gmra.mxu0 %v740
      %v783 = vpop.f32.mrf.mxu0
      %v784 = vadd.f32 %v708, %v783
      %785 = vmatmul.f32.gmra.mxu0 %v743
      %v786 = vpop.f32.mrf.mxu0
      %v787 = vadd.f32 %v713, %v786
      %788 = vmatmul.f32.gmra.mxu0 %v746
      %v789 = vpop.f32.mrf.mxu0
      %v790 = vadd.f32 %v718, %v789
      %791 = vdwg.mxu0
      %792 = vmatpush.msra.mxu0 0.0
      %793 = vmatpush.msra.mxu0 0.0
      %794 = vmatpush.msra.mxu0 0.0
      %795 = vmatpush.msra.mxu0 0.0
      %796 = vmatpush.msra.mxu0 0.0
      %797 = vmatpush.msra.mxu0 0.0
      %798 = vmatpush.msra.mxu0 0.0
      %799 = vmatpush.msra.mxu0 0.0
      %800 = vmatpush.msra.mxu0 0.0
      %801 = vmatpush.msra.mxu0 0.0
      %802 = vmatpush.msra.mxu0 0.0
      %803 = vmatpush.msra.mxu0 0.0
      %804 = vmatpush.msra.mxu0 %v654
      %805 = vmatpush.msra.mxu0 %v650
      %806 = vmatpush.msra.mxu0 %v646
      %807 = vmatpush.msra.mxu0 %v642
      %808 = vmatmul.f32.gmra.mxu0 %v722
      %v809 = vpop.f32.mrf.mxu0
      %v810 = vadd.f32 %v678, %v809
      %811 = vmatmul.f32.gmra.mxu0 %v725
      %v812 = vpop.f32.mrf.mxu0
      %v813 = vadd.f32 %v683, %v812
      %814 = vmatmul.f32.gmra.mxu0 %v728
      %v815 = vpop.f32.mrf.mxu0
      %v816 = vadd.f32 %v688, %v815
      %817 = vmatmul.f32.gmra.mxu0 %v731
      %v818 = vpop.f32.mrf.mxu0
      %v819 = vadd.f32 %v693, %v818
      %820 = vmatmul.f32.gmra.mxu0 %v734
      %v821 = vpop.f32.mrf.mxu0
      %v822 = vadd.f32 %v698, %v821
      %823 = vmatmul.f32.gmra.mxu0 %v737
      %v824 = vpop.f32.mrf.mxu0
      %v825 = vadd.f32 %v703, %v824
      %826 = vmatmul.f32.gmra.mxu0 %v740
      %v827 = vpop.f32.mrf.mxu0
      %v828 = vadd.f32 %v708, %v827
      %829 = vmatmul.f32.gmra.mxu0 %v743
      %v830 = vpop.f32.mrf.mxu0
      %v831 = vadd.f32 %v713, %v830
      %832 = vmatmul.f32.gmra.mxu0 %v746
      %v833 = vpop.f32.mrf.mxu0
      %v834 = vadd.f32 %v718, %v833
      %835 = vdwg.mxu0
      %836 = vmatpush.msra.mxu0 0.0
      %837 = vmatpush.msra.mxu0 0.0
      %838 = vmatpush.msra.mxu0 0.0
      %839 = vmatpush.msra.mxu0 0.0
      %840 = vmatpush.msra.mxu0 0.0
      %841 = vmatpush.msra.mxu0 0.0
      %842 = vmatpush.msra.mxu0 0.0
      %843 = vmatpush.msra.mxu0 0.0
      %844 = vmatpush.msra.mxu0 0.0
      %845 = vmatpush.msra.mxu0 0.0
      %846 = vmatpush.msra.mxu0 0.0
      %847 = vmatpush.msra.mxu0 0.0
      %848 = vmatpush.msra.mxu0 %v655
      %849 = vmatpush.msra.mxu0 %v651
      %850 = vmatpush.msra.mxu0 %v647
      %851 = vmatpush.msra.mxu0 %v643
      %852 = vmatmul.f32.gmra.mxu0 %v722
      %v853 = vpop.f32.mrf.mxu0
      %v854 = vadd.f32 %v678, %v853
      %855 = vmatmul.f32.gmra.mxu0 %v725
      %v856 = vpop.f32.mrf.mxu0
      %v857 = vadd.f32 %v683, %v856
      %858 = vmatmul.f32.gmra.mxu0 %v728
      %v859 = vpop.f32.mrf.mxu0
      %v860 = vadd.f32 %v688, %v859
      %861 = vmatmul.f32.gmra.mxu0 %v731
      %v862 = vpop.f32.mrf.mxu0
      %v863 = vadd.f32 %v693, %v862
      %864 = vmatmul.f32.gmra.mxu0 %v734
      %v865 = vpop.f32.mrf.mxu0
      %v866 = vadd.f32 %v698, %v865
      %867 = vmatmul.f32.gmra.mxu0 %v737
      %v868 = vpop.f32.mrf.mxu0
      %v869 = vadd.f32 %v703, %v868
      %870 = vmatmul.f32.gmra.mxu0 %v740
      %v871 = vpop.f32.mrf.mxu0
      %v872 = vadd.f32 %v708, %v871
      %873 = vmatmul.f32.gmra.mxu0 %v743
      %v874 = vpop.f32.mrf.mxu0
      %v875 = vadd.f32 %v713, %v874
      %876 = vmatmul.f32.gmra.mxu0 %v746
      %v877 = vpop.f32.mrf.mxu0
      %v878 = vadd.f32 %v718, %v877
      %879 = vdwg.mxu0
      %880 = vmatpush.msra.mxu0 0.0
      %881 = vmatpush.msra.mxu0 0.0
      %882 = vmatpush.msra.mxu0 0.0
      %883 = vmatpush.msra.mxu0 0.0
      %884 = vmatpush.msra.mxu0 0.0
      %885 = vmatpush.msra.mxu0 0.0
      %886 = vmatpush.msra.mxu0 0.0
      %887 = vmatpush.msra.mxu0 0.0
      %888 = vmatpush.msra.mxu0 0.0
      %889 = vmatpush.msra.mxu0 0.0
      %890 = vmatpush.msra.mxu0 0.0
      %891 = vmatpush.msra.mxu0 0.0
      %892 = vmatpush.msra.mxu0 %v656
      %893 = vmatpush.msra.mxu0 %v652
      %894 = vmatpush.msra.mxu0 %v648
      %895 = vmatpush.msra.mxu0 %v644
      %896 = vmatmul.f32.gmra.mxu0 %v722
      %v897 = vpop.f32.mrf.mxu0
      %v898 = vadd.f32 %v678, %v897
      %899 = vmatmul.f32.gmra.mxu0 %v725
      %v900 = vpop.f32.mrf.mxu0
      %v901 = vadd.f32 %v683, %v900
      %902 = vmatmul.f32.gmra.mxu0 %v728
      %v903 = vpop.f32.mrf.mxu0
      %v904 = vadd.f32 %v688, %v903
      %905 = vmatmul.f32.gmra.mxu0 %v731
      %v906 = vpop.f32.mrf.mxu0
      %v907 = vadd.f32 %v693, %v906
      %908 = vmatmul.f32.gmra.mxu0 %v734
      %v909 = vpop.f32.mrf.mxu0
      %v910 = vadd.f32 %v698, %v909
      %911 = vmatmul.f32.gmra.mxu0 %v737
      %v912 = vpop.f32.mrf.mxu0
      %v913 = vadd.f32 %v703, %v912
      %914 = vmatmul.f32.gmra.mxu0 %v740
      %v915 = vpop.f32.mrf.mxu0
      %v916 = vadd.f32 %v708, %v915
      %917 = vmatmul.f32.gmra.mxu0 %v743
      %v918 = vpop.f32.mrf.mxu0
      %v919 = vadd.f32 %v713, %v918
      %920 = vmatmul.f32.gmra.mxu0 %v746
      %v921 = vpop.f32.mrf.mxu0
      %v922 = vadd.f32 %v718, %v921
      %923 = vdwg.mxu0
      %v924 = vmax.f32 %v766, 0.0
      %v925 = vmax.f32 %v810, 0.0
      %v926 = vmax.f32 %v854, 0.0
      %v927 = vmax.f32 %v898, 0.0
      %v928 = vmax.f32 %v769, 0.0
      %v929 = vmax.f32 %v813, 0.0
      %v930 = vmax.f32 %v857, 0.0
      %v931 = vmax.f32 %v901, 0.0
      %v932 = vmax.f32 %v772, 0.0
      %v933 = vmax.f32 %v816, 0.0
      %v934 = vmax.f32 %v860, 0.0
      %v935 = vmax.f32 %v904, 0.0
      %v936 = vmax.f32 %v775, 0.0
      %v937 = vmax.f32 %v819, 0.0
      %v938 = vmax.f32 %v863, 0.0
      %v939 = vmax.f32 %v907, 0.0
      %v940 = vmax.f32 %v778, 0.0
      %v941 = vmax.f32 %v822, 0.0
      %v942 = vmax.f32 %v866, 0.0
      %v943 = vmax.f32 %v910, 0.0
      %v944 = vmax.f32 %v781, 0.0
      %v945 = vmax.f32 %v825, 0.0
      %v946 = vmax.f32 %v869, 0.0
      %v947 = vmax.f32 %v913, 0.0
      %v948 = vmax.f32 %v784, 0.0
      %v949 = vmax.f32 %v828, 0.0
      %v950 = vmax.f32 %v872, 0.0
      %v951 = vmax.f32 %v916, 0.0
      %v952 = vmax.f32 %v787, 0.0
      %v953 = vmax.f32 %v831, 0.0
      %v954 = vmax.f32 %v875, 0.0
      %v955 = vmax.f32 %v919, 0.0
      %v956 = vld [vmem:[%s408] sm:$0xff]
      %v957 = vld [vmem:[%s412] sm:$0xff]
      %959 = vset.pattern.permute.xlu0 0
      %960 = vperm.xlu0 %959, %v957
      %v961 = vpop.permute.xlu0 %960
      %vm963 = vcmask 523264
      %v965 = vsel %vm963, %v956, 0
      %967 = vmatpush.msra.mxu0 0.0
      %968 = vmatpush.msra.mxu0 0.0
      %969 = vmatpush.msra.mxu0 0.0
      %970 = vmatpush.msra.mxu0 0.0
      %971 = vmatpush.msra.mxu0 0.0
      %972 = vmatpush.msra.mxu0 0.0
      %973 = vmatpush.msra.mxu0 0.0
      %974 = vmatpush.msra.mxu0 0.0
      %975 = vmatpush.msra.mxu0 %v952
      %976 = vmatpush.msra.mxu0 %v948
      %977 = vmatpush.msra.mxu0 %v944
      %978 = vmatpush.msra.mxu0 %v940
      %979 = vmatpush.msra.mxu0 %v936
      %980 = vmatpush.msra.mxu0 %v932
      %981 = vmatpush.msra.mxu0 %v928
      %982 = vmatpush.msra.mxu0 %v924
      %983 = vmatmul.f32.gmra.mxu0 %v965
      %v984 = vpop.f32.mrf.mxu0
      %v985 = vadd.f32 %v961, %v984
      %986 = vdwg.mxu0
      %987 = vmatpush.msra.mxu0 0.0
      %988 = vmatpush.msra.mxu0 0.0
      %989 = vmatpush.msra.mxu0 0.0
      %990 = vmatpush.msra.mxu0 0.0
      %991 = vmatpush.msra.mxu0 0.0
      %992 = vmatpush.msra.mxu0 0.0
      %993 = vmatpush.msra.mxu0 0.0
      %994 = vmatpush.msra.mxu0 0.0
      %995 = vmatpush.msra.mxu0 %v953
      %996 = vmatpush.msra.mxu0 %v949
      %997 = vmatpush.msra.mxu0 %v945
      %998 = vmatpush.msra.mxu0 %v941
      %999 = vmatpush.msra.mxu0 %v937
      %1000 = vmatpush.msra.mxu0 %v933
      %1001 = vmatpush.msra.mxu0 %v929
      %1002 = vmatpush.msra.mxu0 %v925
      %1003 = vmatmul.f32.gmra.mxu0 %v965
      %v1004 = vpop.f32.mrf.mxu0
      %v1005 = vadd.f32 %v961, %v1004
      %1006 = vdwg.mxu0
      %1007 = vmatpush.msra.mxu0 0.0
      %1008 = vmatpush.msra.mxu0 0.0
      %1009 = vmatpush.msra.mxu0 0.0
      %1010 = vmatpush.msra.mxu0 0.0
      %1011 = vmatpush.msra.mxu0 0.0
      %1012 = vmatpush.msra.mxu0 0.0
      %1013 = vmatpush.msra.mxu0 0.0
      %1014 = vmatpush.msra.mxu0 0.0
      %1015 = vmatpush.msra.mxu0 %v954
      %1016 = vmatpush.msra.mxu0 %v950
      %1017 = vmatpush.msra.mxu0 %v946
      %1018 = vmatpush.msra.mxu0 %v942
      %1019 = vmatpush.msra.mxu0 %v938
      %1020 = vmatpush.msra.mxu0 %v934
      %1021 = vmatpush.msra.mxu0 %v930
      %1022 = vmatpush.msra.mxu0 %v926
      %1023 = vmatmul.f32.gmra.mxu0 %v965
      %v1024 = vpop.f32.mrf.mxu0
      %v1025 = vadd.f32 %v961, %v1024
      %1026 = vdwg.mxu0
      %1027 = vmatpush.msra.mxu0 0.0
      %1028 = vmatpush.msra.mxu0 0.0
      %1029 = vmatpush.msra.mxu0 0.0
      %1030 = vmatpush.msra.mxu0 0.0
      %1031 = vmatpush.msra.mxu0 0.0
      %1032 = vmatpush.msra.mxu0 0.0
      %1033 = vmatpush.msra.mxu0 0.0
      %1034 = vmatpush.msra.mxu0 0.0
      %1035 = vmatpush.msra.mxu0 %v955
      %1036 = vmatpush.msra.mxu0 %v951
      %1037 = vmatpush.msra.mxu0 %v947
      %1038 = vmatpush.msra.mxu0 %v943
      %1039 = vmatpush.msra.mxu0 %v939
      %1040 = vmatpush.msra.mxu0 %v935
      %1041 = vmatpush.msra.mxu0 %v931
      %1042 = vmatpush.msra.mxu0 %v927
      %1043 = vmatmul.f32.gmra.mxu0 %v965
      %v1044 = vpop.f32.mrf.mxu0
      %v1045 = vadd.f32 %v961, %v1044
      %1046 = vdwg.mxu0
      %v1047 = vadd.f32 %v985, %v790
      %v1048 = vadd.f32 %v1005, %v834
      %v1049 = vadd.f32 %v1025, %v878
      %v1050 = vadd.f32 %v1045, %v922
      %v1051 = vrot.slane %v1047, 4
      %v1052 = vmax.f32 %v1047, %v1051
      %v1053 = vrot.slane %v1052, 2
      %v1054 = vmax.f32 %v1052, %v1053
      %v1055 = vrot.slane %v1054, 1
      %v1056 = vmax.f32 %v1054, %v1055
      %v1057 = vrot.slane %v1048, 4
      %v1058 = vmax.f32 %v1048, %v1057
      %v1059 = vrot.slane %v1058, 2
      %v1060 = vmax.f32 %v1058, %v1059
      %v1061 = vrot.slane %v1060, 1
      %v1062 = vmax.f32 %v1060, %v1061
      %v1063 = vrot.slane %v1049, 4
      %v1064 = vmax.f32 %v1049, %v1063
      %v1065 = vrot.slane %v1064, 2
      %v1066 = vmax.f32 %v1064, %v1065
      %v1067 = vrot.slane %v1066, 1
      %v1068 = vmax.f32 %v1066, %v1067
      %v1069 = vrot.slane %v1050, 4
      %v1070 = vmax.f32 %v1050, %v1069
      %v1071 = vrot.slane %v1070, 2
      %v1072 = vmax.f32 %v1070, %v1071
      %v1073 = vrot.slane %v1072, 1
      %v1074 = vmax.f32 %v1072, %v1073
      %v1075 = vsub.f32 %v1047, %v1056
      %v1076 = vsub.f32 %v1048, %v1062
      %v1077 = vsub.f32 %v1049, %v1068
      %v1078 = vsub.f32 %v1050, %v1074
      %v1079 = vmul.f32 %v1075, 1.442695
      %v1080 = vpow.pop %v1079
      %v1081 = vmul.f32 %v1076, 1.442695
      %v1082 = vpow.pop %v1081
      %v1083 = vmul.f32 %v1077, 1.442695
      %v1084 = vpow.pop %v1083
      %v1085 = vmul.f32 %v1078, 1.442695
      %v1086 = vpow.pop %v1085
      %v1087 = vrot.slane %v1080, 4
      %v1088 = vadd.f32 %v1080, %v1087
      %v1089 = vrot.slane %v1088, 2
      %v1090 = vadd.f32 %v1088, %v1089
      %v1091 = vrot.slane %v1090, 1
      %v1092 = vadd.f32 %v1090, %v1091
      %v1093 = vrot.slane %v1082, 4
      %v1094 = vadd.f32 %v1082, %v1093
      %v1095 = vrot.slane %v1094, 2
      %v1096 = vadd.f32 %v1094, %v1095
      %v1097 = vrot.slane %v1096, 1
      %v1098 = vadd.f32 %v1096, %v1097
      %v1099 = vrot.slane %v1084, 4
      %v1100 = vadd.f32 %v1084, %v1099
      %v1101 = vrot.slane %v1100, 2
      %v1102 = vadd.f32 %v1100, %v1101
      %v1103 = vrot.slane %v1102, 1
      %v1104 = vadd.f32 %v1102, %v1103
      %v1105 = vrot.slane %v1086, 4
      %v1106 = vadd.f32 %v1086, %v1105
      %v1107 = vrot.slane %v1106, 2
      %v1108 = vadd.f32 %v1106, %v1107
      %v1109 = vrot.slane %v1108, 1
      %v1110 = vadd.f32 %v1108, %v1109
      %v1111 = vlog2.pop %v1092
      %v1112 = vmul.f32 %v1111, 0.6931472
      %v1113 = vlog2.pop %v1098
      %v1114 = vmul.f32 %v1113, 0.6931472
      %v1115 = vlog2.pop %v1104
      %v1116 = vmul.f32 %v1115, 0.6931472
      %v1117 = vlog2.pop %v1110
      %v1118 = vmul.f32 %v1117, 0.6931472
      %v1119 = vsub.f32 %v1075, %v1112
      %v1120 = vsub.f32 %v1076, %v1114
      %v1121 = vsub.f32 %v1077, %v1116
      %v1122 = vsub.f32 %v1078, %v1118
      %1123 = vst [vmem:[%s422] sm:$0xff] %v1119
      %1124 = vst [vmem:[%s422 + $0x8] sm:$0xff] %v1120
      %1125 = vst [vmem:[%s422 + $0x10] sm:$0xff] %v1121
      %1126 = vst [vmem:[%s422 + $0x18] sm:$0xff] %v1122
      %s1127 = sadd.s32 %s24, %s25
      %s1128 = smul.u32 4, %s1127
      %p1129 = scmp.lt.s32.totalorder %s23, 1
      %s1130 = scalar_select %p1129, %s23, 1
      %p1131 = scmp.lt.s32.totalorder %s1128, 7
      %s1132 = scalar_select %p1131, %s1128, 7
      %s1133 = smul.addr %s1130, 8
      %s1134 = sadd.s32 %s1132, %s1133
      %s1135 = smul.addr %s1134, 8
      %s1136 = scalar_lea.vmem %s7, %s1135
      // Predicated region
      $region49: #{seg_net_forward.1} parent=47 // pred_check
        %p1137 = pneg %p237
      $region50: #{seg_net_forward.1} parent=47 // pred_check_branch
        %1139 = sbr.rel (%p1137) target = $region52
      $region51: #{seg_net_forward.1} parent=47 // pred_region
        %s1140 = sadd.s32 %s24, %s25
        %s1141 = smul.u32 4, %s1140
      $region52: #{seg_net_forward.1} parent=47 // pred_fallthru
        _
    $region48: #{seg_net_forward.1} parent=5 // pred_fallthru
      _
    %p1142 = scmp.le.s32.totalorder 2, %s13
    // Predicated region
    $region53: #{seg_net_forward.1} parent=5 // pred_check
      %p1143 = pneg %p1142
    $region54: #{seg_net_forward.1} parent=5 // pred_check_branch
      %1145 = sbr.rel (%p1143) target = $region56
    $region55: #{seg_net_forward.1} parent=5 // pred_region
      %s1146 = ssub.s32 %s13, 2
      // Predicated region
      $region57: #{seg_net_forward.1} parent=55 // pred_check
        %p1147 = pneg %p243
      $region58: #{seg_net_forward.1} parent=55 // pred_check_branch
        %1149 = sbr.rel (%p1147) target = $region60
      $region59: #{seg_net_forward.1} parent=55 // pred_region
        %s1150 = sadd.s32 %s27, %s28
        %s1151 = smul.u32 4, %s1150
        %p1152 = scmp.lt.s32.totalorder %s26, 1
        %s1153 = scalar_select %p1152, %s26, 1
        %p1154 = scmp.lt.s32.totalorder %s1151, 7
        %s1155 = scalar_select %p1154, %s1151, 7
        %s1156 = smul.addr %s1153, 8
        %s1157 = sadd.s32 %s1155, %s1156
        %s1158 = smul.addr %s1157, 8
        %s1159 = scalar_lea.vmem %s7, %s1158
      $region60: #{seg_net_forward.1} parent=55 // pred_fallthru
        _
    $region56: #{seg_net_forward.1} parent=5 // pred_fallthru
      _
  $region6: #{seg_net_forward.1} parent=0 // loop_footer
    %s17 = sadd.s32 1, %s13
  $region7: #{seg_net_forward.1} parent=0 // loop_footer_branch
    %12 = sbr.rel target = $region3
  $region8: #{seg_net_forward.1} parent=0 // loop_exit
    _

</llo_original>
